<compile_context>
chip_gen: v5e
topology: v5e:2x2
jax: 0.10.0
libtpu: 0.0.40
codegen_flags: <defaults>
</compile_context>

<pallas_src>
import functools

import jax
import jax.numpy as jnp
from jax.experimental import pallas as pl
from jax.experimental.pallas import tpu as pltpu


def _nodestoy_kernel(x_ref, w_ref, b_ref, o_ref, *, dx, n):
    # x_ref: (TB, n, dx)   w_ref: (4*dx, dy)   b_ref: (1, dy)   o_ref: (TB, dy)
    x = x_ref[...]                                   # native dtype

    # min / max in the native dtype (no up-front f32 blow-up for bf16 inputs).
    mi = jnp.min(x, axis=1).astype(jnp.float32)      # (TB, dx)
    ma = jnp.max(x, axis=1).astype(jnp.float32)      # (TB, dx)

    # mean / unbiased std accumulated in f32.
    xf = x.astype(jnp.float32)
    mean = jnp.sum(xf, axis=1) * (1.0 / n)           # (TB, dx)
    if n > 1:
        diff = xf - mean[:, None, :]
        var = jnp.sum(diff * diff, axis=1) * (1.0 / (n - 1))
        std = jnp.sqrt(var)                          # (TB, dx)
    else:
        std = jnp.zeros_like(mean)

    # Four small accumulated MXU matmuls against static slices of W instead of
    # concatenating [mean, min, max, std] along the lane axis.
    stats = (mean, mi, ma, std)
    out = b_ref[...].astype(jnp.float32)             # (1, dy) broadcasts
    for s in range(4):
        out = out + jnp.dot(stats[s], w_ref[s * dx:(s + 1) * dx, :],
                            preferred_element_type=jnp.float32)
    o_ref[...] = out.astype(o_ref.dtype)


def _pick_block_batch(bs, n, dx, itemsize, target_bytes=2 * 1024 * 1024):
    """Batch tile so each X tile is ~2 MiB (pipelines well, fits all VMEMs)."""
    per_row = max(1, n * dx * itemsize)
    tb = max(1, target_bytes // per_row)
    if tb >= bs:
        return bs
    # Output block is (TB, dy): keep its sublane dim a multiple of 8 when TB<bs.
    tb = max(8, (tb // 8) * 8)
    return min(tb, bs)


def nodestoy_forward(x, w, b, *, block_batch=None):
    """x: (bs, n, dx), w: (4*dx, dy) (pre-transposed), b: (dy,) -> (bs, dy)."""
    bs, n, dx = x.shape
    dy = w.shape[1]
    assert w.shape == (4 * dx, dy)
    assert b.shape == (dy,)

    tb = block_batch if block_batch is not None else _pick_block_batch(
        bs, n, dx, x.dtype.itemsize)
    grid = (pl.cdiv(bs, tb),)

    b2d = b.reshape(1, dy)

    flops = 6 * bs * n * dx + 2 * bs * 4 * dx * dy
    bytes_accessed = (x.size * x.dtype.itemsize
                      + w.size * w.dtype.itemsize
                      + b.size * b.dtype.itemsize
                      + bs * dy * x.dtype.itemsize)

    kernel = functools.partial(_nodestoy_kernel, dx=dx, n=n)

    return pl.pallas_call(
        kernel,
        out_shape=jax.ShapeDtypeStruct((bs, dy), x.dtype),
        grid=grid,
        in_specs=[
            pl.BlockSpec((tb, n, dx), lambda i: (i, 0, 0)),   # X tile per step
            pl.BlockSpec((4 * dx, dy), lambda i: (0, 0)),     # W resident
            pl.BlockSpec((1, dy), lambda i: (0, 0)),          # bias resident
        ],
        out_specs=pl.BlockSpec((tb, dy), lambda i: (i, 0)),
        compiler_params=pltpu.CompilerParams(
            dimension_semantics=("parallel",),     # megacore / dual-TC on v7x
            vmem_limit_bytes=32 * 1024 * 1024,
        ),
        cost_estimate=pl.CostEstimate(
            flops=int(flops),
            transcendentals=int(bs * dx),
            bytes_accessed=int(bytes_accessed),
        ),
    )(x, w, b2d)


def reference_forward(x, w, b):
    n = x.shape[1]
    m = jnp.mean(x, axis=1)
    mi = jnp.min(x, axis=1)
    ma = jnp.max(x, axis=1)
    std = jnp.std(x, axis=1, ddof=1) if n > 1 else jnp.zeros_like(m)
    z = jnp.concatenate([m, mi, ma, std], axis=-1)
    return z @ w + b


if __name__ == "__main__":
    key = jax.random.PRNGKey(0)
    kx, kw, kb, kx2 = jax.random.split(key, 4)

    bs, n, dx, dy = 2, 8, 16, 32
    x = jax.random.normal(kx, (bs, n, dx), dtype=jnp.float32)

    # Deterministic Linear(4*dx, dy) init (PyTorch-style uniform bound), stored
    # transposed as (4*dx, dy) so the kernel does z @ W + b.
    bound = 1.0 / jnp.sqrt(4.0 * dx)
    w = jax.random.uniform(kw, (4 * dx, dy), minval=-bound, maxval=bound,
                           dtype=jnp.float32)
    b = jax.random.uniform(kb, (dy,), minval=-bound, maxval=bound,
                           dtype=jnp.float32)

    out = jax.block_until_ready(nodestoy_forward(x, w, b))
    ref = reference_forward(x, w, b)
    assert out.shape == (bs, dy)
    assert jnp.allclose(out, ref, atol=1e-5, rtol=1e-5), "mismatch vs reference"

    # Second check: multi-step grid (pipelined batch tiles), 3 grid steps.
    bs2 = 24
    x2 = jax.random.normal(kx2, (bs2, n, dx), dtype=jnp.float32)
    out2 = jax.block_until_ready(nodestoy_forward(x2, w, b, block_batch=8))
    ref2 = reference_forward(x2, w, b)
    assert out2.shape == (bs2, dy)
    assert jnp.allclose(out2, ref2, atol=1e-5, rtol=1e-5), "grid mismatch"

    print("KERNEL_OK")
</pallas_src>

<mosaic_0001>
module attributes {stable_mosaic.version = 11 : i64} {
  func.func @_nodestoy_kernel(%arg0: i32, %arg1: memref<2x8x16xf32, #tpu.memory_space<vmem>>, %arg2: memref<64x32xf32, #tpu.memory_space<vmem>>, %arg3: memref<1x32xf32, #tpu.memory_space<vmem>>, %arg4: memref<2x32xf32, #tpu.memory_space<vmem>>) attributes {dimension_semantics = [#tpu.dimension_semantics<parallel>], iteration_bounds = array<i64: 1>, scalar_prefetch = 0 : i64, scratch_operands = 0 : i64, tpu.core_type = #tpu.core_type<tc>, window_params = [{transform_indices = @transform_0, window_bounds = array<i64: 2, 8, 16>}, {pipeline_mode = #tpu.pipeline_mode<synchronous>, transform_indices = @transform_1, window_bounds = array<i64: 64, 32>}, {pipeline_mode = #tpu.pipeline_mode<synchronous>, transform_indices = @transform_2, window_bounds = array<i64: 1, 32>}, {transform_indices = @transform_3, window_bounds = array<i64: 2, 32>}]} {
    %c0 = arith.constant 0 : index
    %c0_0 = arith.constant 0 : index
    %c0_1 = arith.constant 0 : index
    %0 = vector.load %arg1[%c0, %c0_0, %c0_1] : memref<2x8x16xf32, #tpu.memory_space<vmem>>, vector<2x8x16xf32>
    %cst = arith.constant dense<0x7F800000> : vector<2x16xf32>
    %1 = vector.multi_reduction <minimumf>, %0, %cst [1] : vector<2x8x16xf32> to vector<2x16xf32>
    %cst_2 = arith.constant dense<0xFF800000> : vector<2x16xf32>
    %2 = vector.multi_reduction <maximumf>, %0, %cst_2 [1] : vector<2x8x16xf32> to vector<2x16xf32>
    %cst_3 = arith.constant dense<0.000000e+00> : vector<2x16xf32>
    %3 = vector.multi_reduction <add>, %0, %cst_3 [1] : vector<2x8x16xf32> to vector<2x16xf32>
    %cst_4 = arith.constant 1.250000e-01 : f32
    %4 = vector.broadcast %cst_4 : f32 to vector<2x16xf32>
    %5 = arith.mulf %3, %4 : vector<2x16xf32>
    %6 = vector.shape_cast %5 : vector<2x16xf32> to vector<2x1x16xf32>
    %7 = vector.broadcast %6 : vector<2x1x16xf32> to vector<2x8x16xf32>
    %8 = arith.subf %0, %7 : vector<2x8x16xf32>
    %9 = arith.mulf %8, %8 : vector<2x8x16xf32>
    %cst_5 = arith.constant dense<0.000000e+00> : vector<2x16xf32>
    %10 = vector.multi_reduction <add>, %9, %cst_5 [1] : vector<2x8x16xf32> to vector<2x16xf32>
    %cst_6 = arith.constant 0.142857149 : f32
    %11 = vector.broadcast %cst_6 : f32 to vector<2x16xf32>
    %12 = arith.mulf %10, %11 : vector<2x16xf32>
    %13 = math.sqrt %12 : vector<2x16xf32>
    %c0_7 = arith.constant 0 : index
    %c0_8 = arith.constant 0 : index
    %14 = vector.load %arg3[%c0_7, %c0_8] : memref<1x32xf32, #tpu.memory_space<vmem>>, vector<1x32xf32>
    %c0_9 = arith.constant 0 : index
    %c0_10 = arith.constant 0 : index
    %15 = vector.load %arg2[%c0_9, %c0_10] : memref<64x32xf32, #tpu.memory_space<vmem>>, vector<16x32xf32>
    %cst_11 = arith.constant dense<0.000000e+00> : vector<2x32xf32>
    %16 = tpu.matmul %5, %15, %cst_11 {dimension_numbers = #tpu.dot_dimension_numbers<[1], [0], [0], [1], [0, 0, 1, 1], [], []>} : vector<2x16xf32>, vector<16x32xf32>, vector<2x32xf32> -> vector<2x32xf32>
    %17 = vector.broadcast %14 : vector<1x32xf32> to vector<2x32xf32>
    %18 = arith.addf %17, %16 : vector<2x32xf32>
    %c16 = arith.constant 16 : index
    %c0_12 = arith.constant 0 : index
    %19 = vector.load %arg2[%c16, %c0_12] : memref<64x32xf32, #tpu.memory_space<vmem>>, vector<16x32xf32>
    %cst_13 = arith.constant dense<0.000000e+00> : vector<2x32xf32>
    %20 = tpu.matmul %1, %19, %cst_13 {dimension_numbers = #tpu.dot_dimension_numbers<[1], [0], [0], [1], [0, 0, 1, 1], [], []>} : vector<2x16xf32>, vector<16x32xf32>, vector<2x32xf32> -> vector<2x32xf32>
    %21 = arith.addf %18, %20 : vector<2x32xf32>
    %c32 = arith.constant 32 : index
    %c0_14 = arith.constant 0 : index
    %22 = vector.load %arg2[%c32, %c0_14] : memref<64x32xf32, #tpu.memory_space<vmem>>, vector<16x32xf32>
    %cst_15 = arith.constant dense<0.000000e+00> : vector<2x32xf32>
    %23 = tpu.matmul %2, %22, %cst_15 {dimension_numbers = #tpu.dot_dimension_numbers<[1], [0], [0], [1], [0, 0, 1, 1], [], []>} : vector<2x16xf32>, vector<16x32xf32>, vector<2x32xf32> -> vector<2x32xf32>
    %24 = arith.addf %21, %23 : vector<2x32xf32>
    %c48 = arith.constant 48 : index
    %c0_16 = arith.constant 0 : index
    %25 = vector.load %arg2[%c48, %c0_16] : memref<64x32xf32, #tpu.memory_space<vmem>>, vector<16x32xf32>
    %cst_17 = arith.constant dense<0.000000e+00> : vector<2x32xf32>
    %26 = tpu.matmul %13, %25, %cst_17 {dimension_numbers = #tpu.dot_dimension_numbers<[1], [0], [0], [1], [0, 0, 1, 1], [], []>} : vector<2x16xf32>, vector<16x32xf32>, vector<2x32xf32> -> vector<2x32xf32>
    %27 = arith.addf %24, %26 : vector<2x32xf32>
    %c0_18 = arith.constant 0 : index
    %c0_19 = arith.constant 0 : index
    %28 = vector.load %arg4[%c0_18, %c0_19] : memref<2x32xf32, #tpu.memory_space<vmem>>, vector<2x32xf32>
    tpu.vector_store %arg4[%c0_18, %c0_19], %27 {strides = array<i32>} : memref<2x32xf32, #tpu.memory_space<vmem>>, vector<2x32xf32>,
    return
  }
  func.func @transform_0(%arg0: i32) -> (i32, i32, i32) {
    %c0_i32 = arith.constant 0 : i32
    %c0_i32_0 = arith.constant 0 : i32
    %c0_i32_1 = arith.constant 0 : i32
    return %arg0, %c0_i32, %c0_i32_0 : i32, i32, i32
  }
  func.func @transform_1(%arg0: i32) -> (i32, i32) {
    %c0_i32 = arith.constant 0 : i32
    %c0_i32_0 = arith.constant 0 : i32
    %c0_i32_1 = arith.constant 0 : i32
    return %c0_i32, %c0_i32_0 : i32, i32
  }
  func.func @transform_2(%arg0: i32) -> (i32, i32) {
    %c0_i32 = arith.constant 0 : i32
    %c0_i32_0 = arith.constant 0 : i32
    %c0_i32_1 = arith.constant 0 : i32
    return %c0_i32, %c0_i32_0 : i32, i32
  }
  func.func @transform_3(%arg0: i32) -> (i32, i32) {
    %c0_i32 = arith.constant 0 : i32
    %c0_i32_0 = arith.constant 0 : i32
    return %arg0, %c0_i32 : i32, i32
  }
}

</mosaic_0001>

<llo_original>
// kernel: tpu_custom_call.1
$region0: #{tpu_custom_call.1}
  #allocation0 [shape = 'u32[]', space=smem, size = 0x4, offset = 0x4, fixed_abs, tag = 'smem constant byte address 0x4 - core index']
  #allocation1 [shape = 'u32[72,128]{1,0:T(1,128)}', space=vmem, size = 0x9000, scoped, tag = 'internal scratch']
  %s0 = inlined_call_operand.vmem [shape: f32[2,8,16], index: 0, kind: input, shape index: {}]
  %s1 = inlined_call_operand.vmem [shape: f32[64,32], index: 1, kind: input, shape index: {}]
  %s2 = inlined_call_operand.vmem [shape: f32[1,32], index: 2, kind: input, shape index: {}]
  %s3 = inlined_call_operand.hbm [shape: f32[2,32], index: 3, kind: output, shape index: {}]
  %s4 = sld [smem:[#allocation0]]
  $region22: #{tpu_custom_call.1} parent=0
    _
  %s6 = ssub.s32 1, %s4
  %s7 = scalar_select 0, %s6, %s4
  $region1: #{tpu_custom_call.1} parent=0
    #allocation2 [shape = 'u8[1024]{0}', space=vmem, size = 0x400, scoped, tag = 'output window, operand 0, single buffered']
    #allocation3 [shape = 's32[1]{0}', space=sflag, size = 0x4, scoped, tag = 'scoped memory for tpu_custom_call.1']
    %8 = vsyncpa [#allocation3], 0
    // Predicated region
    $region2: #{tpu_custom_call.1} parent=1 // pred_check
      _
    $region3: #{tpu_custom_call.1} parent=1 // pred_check_branch
      %10 = sbr.rel (0) target = $region5
    $region4: #{tpu_custom_call.1} parent=1 // pred_region
      _
    $region5: #{tpu_custom_call.1} parent=1 // pred_fallthru
      _
    // Predicated region
    $region6: #{tpu_custom_call.1} parent=1 // pred_check
      _
    $region7: #{tpu_custom_call.1} parent=1 // pred_check_branch
      %12 = sbr.rel (0) target = $region9
    $region8: #{tpu_custom_call.1} parent=1 // pred_region
      _
    $region9: #{tpu_custom_call.1} parent=1 // pred_fallthru
      _
    // Predicated region
    $region10: #{tpu_custom_call.1} parent=1 // pred_check
      _
    $region11: #{tpu_custom_call.1} parent=1 // pred_check_branch
      %14 = sbr.rel (0) target = $region13
    $region12: #{tpu_custom_call.1} parent=1 // pred_region
      _
    $region13: #{tpu_custom_call.1} parent=1 // pred_fallthru
      _
    %v15 = vld [vmem:[%s0] sm:$0xff]
    %v16 = vld [vmem:[%s0 + $0x8] sm:$0xff]
    %vm17 = vcmask 130048
    %v18 = vsel %vm17, %v15, inf
    %v19 = vrot.slane %v18, 4
    %v20 = vmin.f32 %v18, %v19
    %v21 = vrot.slane %v20, 2
    %v22 = vmin.f32 %v20, %v21
    %v23 = vrot.slane %v22, 1
    %v24 = vmin.f32 %v22, %v23
    %v25 = vsel %vm17, %v16, inf
    %v26 = vrot.slane %v25, 4
    %v27 = vmin.f32 %v25, %v26
    %v28 = vrot.slane %v27, 2
    %v29 = vmin.f32 %v27, %v28
    %v30 = vrot.slane %v29, 1
    %v31 = vmin.f32 %v29, %v30
    %v32 = vsel %vm17, %v15, -inf
    %v33 = vrot.slane %v32, 4
    %v34 = vmax.f32 %v32, %v33
    %v35 = vrot.slane %v34, 2
    %v36 = vmax.f32 %v34, %v35
    %v37 = vrot.slane %v36, 1
    %v38 = vmax.f32 %v36, %v37
    %v39 = vsel %vm17, %v16, -inf
    %v40 = vrot.slane %v39, 4
    %v41 = vmax.f32 %v39, %v40
    %v42 = vrot.slane %v41, 2
    %v43 = vmax.f32 %v41, %v42
    %v44 = vrot.slane %v43, 1
    %v45 = vmax.f32 %v43, %v44
    %v46 = vsel %vm17, %v15, 0.0
    %v47 = vrot.slane %v46, 4
    %v48 = vadd.f32 %v46, %v47
    %v49 = vrot.slane %v48, 2
    %v50 = vadd.f32 %v48, %v49
    %v51 = vrot.slane %v50, 1
    %v52 = vadd.f32 %v50, %v51
    %v53 = vsel %vm17, %v16, 0.0
    %v54 = vrot.slane %v53, 4
    %v55 = vadd.f32 %v53, %v54
    %v56 = vrot.slane %v55, 2
    %v57 = vadd.f32 %v55, %v56
    %v58 = vrot.slane %v57, 1
    %v59 = vadd.f32 %v57, %v58
    %v60 = vmul.f32 %v52, 0.125
    %v61 = vmul.f32 %v59, 0.125
    %v62 = vsub.f32 %v15, %v60
    %v63 = vsub.f32 %v16, %v61
    %v64 = vmul.f32 %v62, %v62
    %v65 = vmul.f32 %v63, %v63
    %v66 = vsel %vm17, %v64, 0.0
    %v67 = vrot.slane %v66, 4
    %v68 = vadd.f32 %v66, %v67
    %v69 = vrot.slane %v68, 2
    %v70 = vadd.f32 %v68, %v69
    %v71 = vrot.slane %v70, 1
    %v72 = vadd.f32 %v70, %v71
    %v73 = vsel %vm17, %v65, 0.0
    %v74 = vrot.slane %v73, 4
    %v75 = vadd.f32 %v73, %v74
    %v76 = vrot.slane %v75, 2
    %v77 = vadd.f32 %v75, %v76
    %v78 = vrot.slane %v77, 1
    %v79 = vadd.f32 %v77, %v78
    %v80 = vmul.f32 %v72, 0.14285715
    %v81 = vmul.f32 %v79, 0.14285715
    %v82 = vrsqrt.pop %v80
    %v83 = vmul.f32 %v82, %v80
    %v84 = vmul.f32 %v83, %v82
    %v85 = vmul.f32 0.5, %v84
    %v86 = vsub.f32 1.5, %v85
    %v87 = vmul.f32 %v82, %v86
    %v88 = vmul.f32 %v80, %v87
    %vm89 = vcmp.eq.f32.partialorder %v80, inf
    %v90 = vsel %vm89, %v80, %v88
    %vm91 = vcmp.eq.f32.partialorder %v80, 0.0
    %v92 = vand.u32 %v80, 2147483648
    %v93 = vsel %vm91, %v92, %v90
    %v94 = vrsqrt.pop %v81
    %v95 = vmul.f32 %v94, %v81
    %v96 = vmul.f32 %v95, %v94
    %v97 = vmul.f32 0.5, %v96
    %v98 = vsub.f32 1.5, %v97
    %v99 = vmul.f32 %v94, %v98
    %v100 = vmul.f32 %v81, %v99
    %vm101 = vcmp.eq.f32.partialorder %v81, inf
    %v102 = vsel %vm101, %v81, %v100
    %vm103 = vcmp.eq.f32.partialorder %v81, 0.0
    %v104 = vand.u32 %v81, 2147483648
    %v105 = vsel %vm103, %v104, %v102
    %v106 = vld [vmem:[%s2] sm:$0x1]
    %v107 = vld [vmem:[%s1] sm:$0xff]
    %v108 = vld [vmem:[%s1 + $0x8] sm:$0xff]
    %vm111 = vcmask 1041409
    %v112 = vsel %vm111, %v61, %v60
    %v113 = vsel %vm17, %v112, 0
    %115 = vmatpush.msra.mxu0 0.0
    %116 = vmatpush.msra.mxu0 0.0
    %117 = vmatpush.msra.mxu0 0.0
    %118 = vmatpush.msra.mxu0 0.0
    %119 = vmatpush.msra.mxu0 0.0
    %120 = vmatpush.msra.mxu0 0.0
    %121 = vmatpush.msra.mxu0 0.0
    %122 = vmatpush.msra.mxu0 0.0
    %123 = vmatpush.msra.mxu0 0.0
    %124 = vmatpush.msra.mxu0 0.0
    %125 = vmatpush.msra.mxu0 0.0
    %126 = vmatpush.msra.mxu0 0.0
    %127 = vmatpush.msra.mxu0 0.0
    %128 = vmatpush.msra.mxu0 0.0
    %129 = vmatpush.msra.mxu0 %v108
    %130 = vmatpush.msra.mxu0 %v107
    %131 = vmatmul.f32.gmra.mxu0 %v113
    %v132 = vpop.f32.mrf.mxu0
    %v133 = vadd.f32 0.0, %v132
    %134 = vdwg.mxu0
    %v136 = vperm.slane %v106, 0
    %v138 = vadd.f32 %v136, %v133
    %v139 = vld [vmem:[%s1 + $0x10] sm:$0xff]
    %v140 = vld [vmem:[%s1 + $0x18] sm:$0xff]
    %v143 = vsel %vm111, %v31, %v24
    %v144 = vsel %vm17, %v143, 0
    %146 = vmatpush.msra.mxu0 0.0
    %147 = vmatpush.msra.mxu0 0.0
    %148 = vmatpush.msra.mxu0 0.0
    %149 = vmatpush.msra.mxu0 0.0
    %150 = vmatpush.msra.mxu0 0.0
    %151 = vmatpush.msra.mxu0 0.0
    %152 = vmatpush.msra.mxu0 0.0
    %153 = vmatpush.msra.mxu0 0.0
    %154 = vmatpush.msra.mxu0 0.0
    %155 = vmatpush.msra.mxu0 0.0
    %156 = vmatpush.msra.mxu0 0.0
    %157 = vmatpush.msra.mxu0 0.0
    %158 = vmatpush.msra.mxu0 0.0
    %159 = vmatpush.msra.mxu0 0.0
    %160 = vmatpush.msra.mxu0 %v140
    %161 = vmatpush.msra.mxu0 %v139
    %162 = vmatmul.f32.gmra.mxu0 %v144
    %v163 = vpop.f32.mrf.mxu0
    %v164 = vadd.f32 0.0, %v163
    %165 = vdwg.mxu0
    %v166 = vadd.f32 %v138, %v164
    %v167 = vld [vmem:[%s1 + $0x20] sm:$0xff]
    %v168 = vld [vmem:[%s1 + $0x28] sm:$0xff]
    %v171 = vsel %vm111, %v45, %v38
    %v172 = vsel %vm17, %v171, 0
    %174 = vmatpush.msra.mxu0 0.0
    %175 = vmatpush.msra.mxu0 0.0
    %176 = vmatpush.msra.mxu0 0.0
    %177 = vmatpush.msra.mxu0 0.0
    %178 = vmatpush.msra.mxu0 0.0
    %179 = vmatpush.msra.mxu0 0.0
    %180 = vmatpush.msra.mxu0 0.0
    %181 = vmatpush.msra.mxu0 0.0
    %182 = vmatpush.msra.mxu0 0.0
    %183 = vmatpush.msra.mxu0 0.0
    %184 = vmatpush.msra.mxu0 0.0
    %185 = vmatpush.msra.mxu0 0.0
    %186 = vmatpush.msra.mxu0 0.0
    %187 = vmatpush.msra.mxu0 0.0
    %188 = vmatpush.msra.mxu0 %v168
    %189 = vmatpush.msra.mxu0 %v167
    %190 = vmatmul.f32.gmra.mxu0 %v172
    %v191 = vpop.f32.mrf.mxu0
    %v192 = vadd.f32 0.0, %v191
    %193 = vdwg.mxu0
    %v194 = vadd.f32 %v166, %v192
    %v195 = vld [vmem:[%s1 + $0x30] sm:$0xff]
    %v196 = vld [vmem:[%s1 + $0x38] sm:$0xff]
    %v199 = vsel %vm111, %v105, %v93
    %v200 = vsel %vm17, %v199, 0
    %202 = vmatpush.msra.mxu0 0.0
    %203 = vmatpush.msra.mxu0 0.0
    %204 = vmatpush.msra.mxu0 0.0
    %205 = vmatpush.msra.mxu0 0.0
    %206 = vmatpush.msra.mxu0 0.0
    %207 = vmatpush.msra.mxu0 0.0
    %208 = vmatpush.msra.mxu0 0.0
    %209 = vmatpush.msra.mxu0 0.0
    %210 = vmatpush.msra.mxu0 0.0
    %211 = vmatpush.msra.mxu0 0.0
    %212 = vmatpush.msra.mxu0 0.0
    %213 = vmatpush.msra.mxu0 0.0
    %214 = vmatpush.msra.mxu0 0.0
    %215 = vmatpush.msra.mxu0 0.0
    %216 = vmatpush.msra.mxu0 %v196
    %217 = vmatpush.msra.mxu0 %v195
    %218 = vmatmul.f32.gmra.mxu0 %v200
    %v219 = vpop.f32.mrf.mxu0
    %v220 = vadd.f32 0.0, %v219
    %221 = vdwg.mxu0
    %v222 = vadd.f32 %v194, %v220
    %vm223 = vcmask 254976
    %224 = vst.msk [vmem:[#allocation2] sm:$0x3] %vm223, %v222
    // Predicated region
    $region14: #{tpu_custom_call.1} parent=1 // pred_check
      _
    $region15: #{tpu_custom_call.1} parent=1 // pred_check_branch
      %226 = sbr.rel (0) target = $region17
    $region16: #{tpu_custom_call.1} parent=1 // pred_region
      %228 = vsyncadd [#allocation3], 0
      %s230 = sshll.u32 [#allocation2], 4
      %s231 = int_to_ptr.vmem [resolvable:$true] %s230
      %s232 = sshll.u32 %s3, 4
      %s233 = int_to_ptr.hbm [resolvable:$true] %s232
      %235 = dma.vmem_to_hbm [thread:$0]  %s231, 32, %s233, [#allocation3]
    $region17: #{tpu_custom_call.1} parent=1 // pred_fallthru
      _
    // Predicated region
    $region18: #{tpu_custom_call.1} parent=1 // pred_check
      _
    $region19: #{tpu_custom_call.1} parent=1 // pred_check_branch
      %237 = sbr.rel (0) target = $region21
    $region20: #{tpu_custom_call.1} parent=1 // pred_region
      %239 = dma.done [#allocation3], 32
    $region21: #{tpu_custom_call.1} parent=1 // pred_fallthru
      _
    %240 = vsyncpa [#allocation3], 1

</llo_original>
